<compile_context>
chip_gen: v7x
topology: tpu7x:2x2x1
jax: 0.10.0
libtpu: 0.0.40
codegen_flags: <defaults>
</compile_context>

<pallas_src>
import functools

import jax
import jax.numpy as jnp
from jax.experimental import pallas as pl
from jax.experimental.pallas import tpu as pltpu


_LANE = 128      # lane width (last-dim granularity)
_SUBLANE = 8     # sublane granularity (second-to-last dim)
_MAX_TM = 512    # max rows per tile
_MAX_TN = 1024   # max output features per tile (lane-dense)
_MAX_TK = 2048   # max reduction width per K step


def _cdiv(a, b):
    return -(-a // b)


def _round_up(a, b):
    return _cdiv(a, b) * b


def _vmem_budget_bytes():
    """Per-core VMEM budget with headroom for compiler scratch / semaphores."""
    cap = 64 * 1024 * 1024  # conservative default == v7x per-core VMEM
    try:
        cap = int(pltpu.get_tpu_info().vmem_capacity_bytes)
    except Exception:
        pass
    return (cap // 4) * 3   # leave ~25% headroom


_VMEM_BUDGET = _vmem_budget_bytes()


def _plan_kn(in_dim, out_dim):
    """K/N padding + tiles. Depends only on layer dims so weight prep can be hoisted."""
    # N (output features, lane axis): pad to 128; single tile up to _MAX_TN,
    # otherwise near-equal 128-aligned tiles with minimal padding.
    n_pad = _round_up(out_dim, _LANE)
    if n_pad <= _MAX_TN:
        tn = n_pad
    else:
        n_tiles = _cdiv(n_pad, _MAX_TN)
        tn = _round_up(_cdiv(n_pad, n_tiles), _LANE)
        n_pad = tn * n_tiles
    # K (reduction): single unpadded step up to _MAX_TK (no extra HBM traffic);
    # only split into 128-aligned chunks (minimal padding) when K is very wide.
    if in_dim <= _MAX_TK:
        tk, k_pad = in_dim, in_dim
    else:
        k_tiles = _cdiv(in_dim, _MAX_TK)
        tk = _round_up(_cdiv(in_dim, k_tiles), _LANE)
        k_pad = tk * k_tiles
    return tk, k_pad, tn, n_pad


def _plan_tiles(m, in_dim, out_dim):
    tk, k_pad, tn, n_pad = _plan_kn(in_dim, out_dim)
    # M (rows, sublane axis): minimal padding to a multiple of 8; single tile
    # up to _MAX_TM, otherwise near-equal 8-aligned tiles.
    if m <= _MAX_TM:
        tm = _round_up(max(m, 1), _SUBLANE)
        m_pad = tm
    else:
        m_tiles = _cdiv(m, _MAX_TM)
        tm = _round_up(_cdiv(m, m_tiles), _SUBLANE)
        m_pad = tm * m_tiles
    # v7x has 2 TensorCores: expose >= 2 blocks on the parallel (i, j) axes
    # whenever that costs zero extra padding (cheap no-op on v5e/v6e).
    if (m_pad // tm) * (n_pad // tn) == 1:
        if n_pad % (2 * _LANE) == 0:
            tn = n_pad // 2
        elif m_pad % (2 * _SUBLANE) == 0:
            tm = m_pad // 2
    return tm, tn, tk, m_pad, k_pad, n_pad


# --------------------------- kernels ---------------------------------------


def _kernel_single_k(x_ref, w_ref, b_ref, o_ref):
    # Single reduction step: biased result written directly, no scratch.
    o_ref[...] = (
        jnp.dot(x_ref[...], w_ref[...], preferred_element_type=jnp.float32)
        + b_ref[...]
    ).astype(o_ref.dtype)


def _kernel_multi_k_f32(x_ref, w_ref, b_ref, o_ref):
    # f32 output: accumulate straight into the K-resident output block.
    @pl.when(pl.program_id(2) == 0)
    def _():
        o_ref[...] = jnp.broadcast_to(b_ref[...], o_ref.shape)

    o_ref[...] += jnp.dot(
        x_ref[...], w_ref[...], preferred_element_type=jnp.float32
    )


def _kernel_multi_k_acc(x_ref, w_ref, b_ref, o_ref, acc_ref):
    # Narrow output dtype: accumulate in f32 scratch, cast once at the end.
    k = pl.program_id(2)

    @pl.when(k == 0)
    def _():
        acc_ref[...] = jnp.broadcast_to(b_ref[...], acc_ref.shape)

    acc_ref[...] += jnp.dot(
        x_ref[...], w_ref[...], preferred_element_type=jnp.float32
    )

    @pl.when(k == pl.num_programs(2) - 1)
    def _():
        o_ref[...] = acc_ref[...].astype(o_ref.dtype)


# --------------------------- wrappers ---------------------------------------


def prepare_affine_params(weight, bias, *, compute_dtype=None):
    """One-time layout prep for an AffineLinear layer.

    Transposes the PyTorch-layout (out_dim, in_dim) weight to (in_dim, out_dim),
    zero-pads K/N to the kernel's grid, and casts to compute_dtype
    (jnp.bfloat16 recommended on v6e/v7x; accumulation stays f32). Doing this
    once per layer (not per call) avoids re-streaming the weight on every call.
    """
    out_dim, in_dim = weight.shape
    if compute_dtype is None:
        compute_dtype = weight.dtype
    _, k_pad, _, n_pad = _plan_kn(in_dim, out_dim)
    w_t = weight.astype(compute_dtype).T  # (in_dim, out_dim)
    if (k_pad, n_pad) != (in_dim, out_dim):
        w_t = jnp.pad(w_t, ((0, k_pad - in_dim), (0, n_pad - out_dim)))
    b_row = bias.astype(jnp.float32).reshape(1, out_dim)
    if n_pad != out_dim:
        b_row = jnp.pad(b_row, ((0, 0), (0, n_pad - out_dim)))
    return w_t, b_row


@functools.partial(jax.jit, static_argnames=("out_dim",))
def affine_linear_prepared(x, w_t, b_row, *, out_dim):
    """y = x @ W.T + b, given pre-transposed/padded weight from prepare_affine_params."""
    orig_shape = x.shape
    in_dim = orig_shape[-1]
    x2 = x.reshape(-1, in_dim)
    m = x2.shape[0]
    k_pad_w, n_pad_w = w_t.shape
    out_dtype = x.dtype
    compute_dtype = w_t.dtype

    tm, tn, tk, m_pad, k_pad, n_pad = _plan_tiles(m, in_dim, out_dim)
    if (k_pad, n_pad) != (k_pad_w, n_pad_w):
        raise ValueError(
            f"prepared weight shape {w_t.shape} does not match expected "
            f"({k_pad}, {n_pad}); re-run prepare_affine_params for this layer."
        )

    grid_m, grid_n, grid_k = m_pad // tm, n_pad // tn, k_pad // tk

    # Pad x only when actually needed; zero rows/cols contribute nothing.
    x_p = x2.astype(compute_dtype)
    if (m_pad, k_pad) != (m, in_dim):
        x_p = jnp.pad(x_p, ((0, m_pad - m), (0, k_pad - in_dim)))

    in_b = jnp.dtype(compute_dtype).itemsize
    out_b = jnp.dtype(out_dtype).itemsize
    use_scratch = grid_k > 1 and out_dtype != jnp.float32
    est = 2 * (tm * tk * in_b + tk * tn * in_b + tn * 4 + tm * tn * out_b)
    if use_scratch:
        est += tm * tn * 4
    vmem_limit = int(min(_VMEM_BUDGET, max(32 * 1024 * 1024, 2 * est)))

    cost = pl.CostEstimate(
        flops=int(2 * m_pad * k_pad * n_pad),
        transcendentals=0,
        bytes_accessed=int(
            m_pad * k_pad * in_b * grid_n      # x streamed once per N tile
            + k_pad * n_pad * in_b * grid_m    # W streamed once per M tile
            + m_pad * n_pad * out_b            # output written once
            + n_pad * 4                        # bias
        ),
    )

    if grid_k == 1:
        y_pad = pl.pallas_call(
            _kernel_single_k,
            out_shape=jax.ShapeDtypeStruct((m_pad, n_pad), out_dtype),
            grid_spec=pltpu.PrefetchScalarGridSpec(
                num_scalar_prefetch=0,
                grid=(grid_m, grid_n),
                in_specs=[
                    pl.BlockSpec((tm, tk), lambda i, j: (i, 0)),   # x rows
                    pl.BlockSpec((tk, tn), lambda i, j: (0, j)),   # weight
                    pl.BlockSpec((1, tn), lambda i, j: (0, j)),    # bias
                ],
                out_specs=pl.BlockSpec((tm, tn), lambda i, j: (i, j)),
            ),
            compiler_params=pltpu.CompilerParams(
                dimension_semantics=("parallel", "parallel"),
                vmem_limit_bytes=vmem_limit,
            ),
            cost_estimate=cost,
        )(x_p, w_t, b_row)
    else:
        kernel = _kernel_multi_k_acc if use_scratch else _kernel_multi_k_f32
        scratch = [pltpu.VMEM((tm, tn), jnp.float32)] if use_scratch else []
        y_pad = pl.pallas_call(
            kernel,
            out_shape=jax.ShapeDtypeStruct((m_pad, n_pad), out_dtype),
            grid_spec=pltpu.PrefetchScalarGridSpec(
                num_scalar_prefetch=0,
                grid=(grid_m, grid_n, grid_k),
                in_specs=[
                    pl.BlockSpec((tm, tk), lambda i, j, k: (i, k)),
                    pl.BlockSpec((tk, tn), lambda i, j, k: (k, j)),
                    pl.BlockSpec((1, tn), lambda i, j, k: (0, j)),
                ],
                out_specs=pl.BlockSpec((tm, tn), lambda i, j, k: (i, j)),
                scratch_shapes=scratch,
            ),
            compiler_params=pltpu.CompilerParams(
                dimension_semantics=("parallel", "parallel", "arbitrary"),
                vmem_limit_bytes=vmem_limit,
            ),
            cost_estimate=cost,
        )(x_p, w_t, b_row)

    y = y_pad[:m, :out_dim]
    return y.reshape(*orig_shape[:-1], out_dim)


def affine_linear(x, weight, bias, *, compute_dtype=None):
    """Equivalent of AffineLinear / nn.Linear forward: y = x @ weight.T + bias."""
    w_t, b_row = prepare_affine_params(weight, bias, compute_dtype=compute_dtype)
    return affine_linear_prepared(x, w_t, b_row, out_dim=weight.shape[0])


if __name__ == "__main__":
    key = jax.random.PRNGKey(0)

    # --- 1) small nn.Linear(32, 64) forward, f32, single-K / single-tile ----
    in_dim, out_dim, M = 32, 64, 8
    kx, kw, kb, key = jax.random.split(key, 4)
    bound = 1.0 / (in_dim ** 0.5)  # mimics nn.Linear uniform init
    weight = jax.random.uniform(kw, (out_dim, in_dim), jnp.float32, -bound, bound)
    bias = jax.random.uniform(kb, (out_dim,), jnp.float32, -bound, bound)
    x = jax.random.normal(kx, (M, in_dim), jnp.float32)

    y = affine_linear(x, weight, bias)
    jax.block_until_ready(y)
    y_ref = x @ weight.T + bias
    assert y.shape == (M, out_dim)
    assert jnp.allclose(y, y_ref, atol=1e-5, rtol=1e-5)

    # --- 2) ragged shapes + hoisted weight prep + bf16 MXU fast path --------
    M2, in2, out2 = 300, 600, 200
    k2x, k2w, k2b, key = jax.random.split(key, 4)
    x2 = jax.random.normal(k2x, (M2, in2), jnp.float32)
    w2 = jax.random.normal(k2w, (out2, in2), jnp.float32) * 0.02
    b2 = jax.random.normal(k2b, (out2,), jnp.float32)
    w2_t, b2_row = prepare_affine_params(w2, b2, compute_dtype=jnp.bfloat16)
    y2 = affine_linear_prepared(x2, w2_t, b2_row, out_dim=out2)
    jax.block_until_ready(y2)
    assert y2.shape == (M2, out2)
    assert jnp.allclose(y2, x2 @ w2.T + b2, atol=5e-2, rtol=5e-2)

    # --- 3) wide reduction (K split across grid steps), f32 output ----------
    M3, in3, out3 = 16, 2100, 128
    k3x, k3w, k3b, key = jax.random.split(key, 4)
    x3 = jax.random.normal(k3x, (M3, in3), jnp.float32)
    w3 = jax.random.normal(k3w, (out3, in3), jnp.float32) * 0.02
    b3 = jax.random.normal(k3b, (out3,), jnp.float32)
    y3 = affine_linear(x3, w3, b3)
    jax.block_until_ready(y3)
    assert y3.shape == (M3, out3)
    assert jnp.allclose(y3, x3 @ w3.T + b3, atol=5e-3, rtol=5e-3)

    print("KERNEL_OK")
</pallas_src>

<mosaic_0001>
module attributes {stable_mosaic.version = 11 : i64} {
  func.func @_kernel_single_k(%arg0: i32, %arg1: i32, %arg2: memref<8x32xf32, #tpu.memory_space<vmem>>, %arg3: memref<32x128xf32, #tpu.memory_space<vmem>>, %arg4: memref<1x128xf32, #tpu.memory_space<vmem>>, %arg5: memref<8x128xf32, #tpu.memory_space<vmem>>) attributes {dimension_semantics = [#tpu.dimension_semantics<parallel>, #tpu.dimension_semantics<parallel>], iteration_bounds = array<i64: 1, 1>, scalar_prefetch = 0 : i64, scratch_operands = 0 : i64, tpu.core_type = #tpu.core_type<tc>, window_params = [{transform_indices = @transform_0, window_bounds = array<i64: 8, 32>}, {transform_indices = @transform_1, window_bounds = array<i64: 32, 128>}, {transform_indices = @transform_2, window_bounds = array<i64: 1, 128>}, {transform_indices = @transform_3, window_bounds = array<i64: 8, 128>}]} {
    %c0 = arith.constant 0 : index
    %c0_0 = arith.constant 0 : index
    %0 = vector.load %arg2[%c0, %c0_0] : memref<8x32xf32, #tpu.memory_space<vmem>>, vector<8x32xf32>
    %c0_1 = arith.constant 0 : index
    %c0_2 = arith.constant 0 : index
    %1 = vector.load %arg3[%c0_1, %c0_2] : memref<32x128xf32, #tpu.memory_space<vmem>>, vector<32x128xf32>
    %cst = arith.constant dense<0.000000e+00> : vector<8x128xf32>
    %2 = tpu.matmul %0, %1, %cst {dimension_numbers = #tpu.dot_dimension_numbers<[1], [0], [0], [1], [0, 0, 1, 1], [], []>} : vector<8x32xf32>, vector<32x128xf32>, vector<8x128xf32> -> vector<8x128xf32>
    %c0_3 = arith.constant 0 : index
    %c0_4 = arith.constant 0 : index
    %3 = vector.load %arg4[%c0_3, %c0_4] : memref<1x128xf32, #tpu.memory_space<vmem>>, vector<1x128xf32>
    %4 = vector.broadcast %3 : vector<1x128xf32> to vector<8x128xf32>
    %5 = arith.addf %2, %4 : vector<8x128xf32>
    %c0_5 = arith.constant 0 : index
    %c0_6 = arith.constant 0 : index
    %6 = vector.load %arg5[%c0_5, %c0_6] : memref<8x128xf32, #tpu.memory_space<vmem>>, vector<8x128xf32>
    tpu.vector_store %arg5[%c0_5, %c0_6], %5 {strides = array<i32>} : memref<8x128xf32, #tpu.memory_space<vmem>>, vector<8x128xf32>,
    return
  }
  func.func @transform_0(%arg0: i32, %arg1: i32) -> (i32, i32) {
    %c0_i32 = arith.constant 0 : i32
    %c0_i32_0 = arith.constant 0 : i32
    return %arg0, %c0_i32 : i32, i32
  }
  func.func @transform_1(%arg0: i32, %arg1: i32) -> (i32, i32) {
    %c0_i32 = arith.constant 0 : i32
    %c0_i32_0 = arith.constant 0 : i32
    return %c0_i32, %arg1 : i32, i32
  }
  func.func @transform_2(%arg0: i32, %arg1: i32) -> (i32, i32) {
    %c0_i32 = arith.constant 0 : i32
    %c0_i32_0 = arith.constant 0 : i32
    return %c0_i32, %arg1 : i32, i32
  }
  func.func @transform_3(%arg0: i32, %arg1: i32) -> (i32, i32) {
    %c0_i32 = arith.constant 0 : i32
    return %arg0, %arg1 : i32, i32
  }
}

</mosaic_0001>

<llo_original>
// kernel: affine_linear_prepared.1
$region0: #{affine_linear_prepared.1}
  #allocation0 [shape = 'u32[]', space=smem, size = 0x4, offset = 0x4, fixed_abs, tag = 'smem constant byte address 0x4 - core index']
  #allocation1 [shape = 'u32[144,128]{1,0:T(1,128)}', space=vmem, size = 0x12000, scoped, tag = 'internal scratch']
  %s0 = inlined_call_operand.hbm [shape: f32[8,32], index: 0, kind: input, shape index: {}]
  %s1 = inlined_call_operand.hbm [shape: f32[32,128], index: 1, kind: input, shape index: {}]
  %s2 = inlined_call_operand.vmem [shape: f32[1,128], index: 2, kind: input, shape index: {}]
  %s3 = inlined_call_operand.hbm [shape: f32[8,128], index: 3, kind: output, shape index: {}]
  %s4 = sld [smem:[#allocation0]]
  $region30: #{affine_linear_prepared.1} parent=0
    _
  %s6 = ssub.s32 1, %s4
  %s7 = scalar_select 0, %s6, %s4
  $region1: #{affine_linear_prepared.1} parent=0
    #allocation2 [shape = 'u8[4096]{0}', space=vmem, size = 0x1000, scoped, tag = 'input window, operand 0, single buffered']
    #allocation3 [shape = 's32[1]{0}', space=sflag, size = 0x4, scoped, tag = 'scoped memory for affine_linear_prepared.1']
    #allocation4 [shape = 's32[1]{0}', space=sflag, size = 0x4, scoped, tag = 'scoped memory for affine_linear_prepared.1']
    #allocation5 [shape = 'u8[16384]{0}', space=vmem, size = 0x4000, scoped, tag = 'input window, operand 1, single buffered']
    #allocation6 [shape = 's32[1]{0}', space=sflag, size = 0x4, scoped, tag = 'scoped memory for affine_linear_prepared.1']
    #allocation7 [shape = 'u8[4096]{0}', space=vmem, size = 0x1000, scoped, tag = 'output window, operand 0, single buffered']
    %8 = vsyncpa [#allocation3], 0
    %9 = vsyncpa [#allocation6], 0
    %10 = vsyncpa [#allocation4], 0
    // Predicated region
    $region2: #{affine_linear_prepared.1} parent=1 // pred_check
      _
    $region3: #{affine_linear_prepared.1} parent=1 // pred_check_branch
      %12 = sbr.rel (0) target = $region5
    $region4: #{affine_linear_prepared.1} parent=1 // pred_region
      %s14 = ssub.s32 128, 128
      %15 = vsyncadd [#allocation3], %s14
      %s17 = sshll.u32 [#allocation2], 4
      %s18 = int_to_ptr.vmem [resolvable:$true] %s17
      %20 = dma.hbm_to_vmem [thread:$0]  %s0, 128, %s18, [#allocation3]
    $region5: #{affine_linear_prepared.1} parent=1 // pred_fallthru
      _
    // Predicated region
    $region6: #{affine_linear_prepared.1} parent=1 // pred_check
      _
    $region7: #{affine_linear_prepared.1} parent=1 // pred_check_branch
      %22 = sbr.rel (0) target = $region9
    $region8: #{affine_linear_prepared.1} parent=1 // pred_region
      %s24 = ssub.s32 512, 512
      %25 = vsyncadd [#allocation6], %s24
      %s26 = sshll.u32 [#allocation5], 4
      %s27 = int_to_ptr.vmem [resolvable:$true] %s26
      %32 = dma.hbm_to_vmem [thread:$0]  %s1, 512, %s27, [#allocation6], 128, 128, 8
    $region9: #{affine_linear_prepared.1} parent=1 // pred_fallthru
      _
    // Predicated region
    $region10: #{affine_linear_prepared.1} parent=1 // pred_check
      _
    $region11: #{affine_linear_prepared.1} parent=1 // pred_check_branch
      %34 = sbr.rel (0) target = $region13
    $region12: #{affine_linear_prepared.1} parent=1 // pred_region
      _
    $region13: #{affine_linear_prepared.1} parent=1 // pred_fallthru
      _
    // Predicated region
    $region14: #{affine_linear_prepared.1} parent=1 // pred_check
      _
    $region15: #{affine_linear_prepared.1} parent=1 // pred_check_branch
      %36 = sbr.rel (0) target = $region17
    $region16: #{affine_linear_prepared.1} parent=1 // pred_region
      %37 = dma.done [#allocation3], 128
    $region17: #{affine_linear_prepared.1} parent=1 // pred_fallthru
      _
    // Predicated region
    $region18: #{affine_linear_prepared.1} parent=1 // pred_check
      _
    $region19: #{affine_linear_prepared.1} parent=1 // pred_check_branch
      %39 = sbr.rel (0) target = $region21
    $region20: #{affine_linear_prepared.1} parent=1 // pred_region
      %40 = dma.done [#allocation6], 512
    $region21: #{affine_linear_prepared.1} parent=1 // pred_fallthru
      _
    %v41 = vld [vmem:[#allocation2] sm:$0xff]
    %v42 = vld [vmem:[#allocation5] sm:$0xff]
    %v43 = vld [vmem:[#allocation5 + $0x8] sm:$0xff]
    %v44 = vld [vmem:[#allocation5 + $0x10] sm:$0xff]
    %v45 = vld [vmem:[#allocation5 + $0x18] sm:$0xff]
    %v46 = vld [vmem:[%s2] sm:$0x1]
    %v48 = vlaneseq
    %v49 = vshrl.u32 %v48, 7
    %v50 = vsub.s32 0, %v49
    %v51 = vrot.slane %v46, %v50
    %vm53 = vcmask 261120
    %v55 = vsel %vm53, %v41, 0
    %57 = vmatprep.subr.mxu0 0.0
    %58 = vmatpush1.msra.mxu0 %v42
    %59 = vmatprep.subr.mxu0 0.0
    %60 = vmatpush1.msra.mxu0 %v43
    %61 = vmatprep.subr.mxu0 0.0
    %62 = vmatpush1.msra.mxu0 %v44
    %63 = vmatprep.subr.mxu0 0.0
    %64 = vmatpush1.msra.mxu0 %v45
    %65 = vmatprep.subr.mxu0 0.0
    %66 = vmatpush1.msra.mxu0 0.0
    %67 = vmatprep.subr.mxu0 0.0
    %68 = vmatpush1.msra.mxu0 0.0
    %69 = vmatprep.subr.mxu0 0.0
    %70 = vmatpush1.msra.mxu0 0.0
    %71 = vmatprep.subr.mxu0 0.0
    %72 = vmatpush1.msra.mxu0 0.0
    %73 = vmatprep.subr.mxu0 0.0
    %74 = vmatpush1.msra.mxu0 0.0
    %75 = vmatprep.subr.mxu0 0.0
    %76 = vmatpush1.msra.mxu0 0.0
    %77 = vmatprep.subr.mxu0 0.0
    %78 = vmatpush1.msra.mxu0 0.0
    %79 = vmatprep.subr.mxu0 0.0
    %80 = vmatpush1.msra.mxu0 0.0
    %81 = vmatprep.subr.mxu0 0.0
    %82 = vmatpush1.msra.mxu0 0.0
    %83 = vmatprep.subr.mxu0 0.0
    %84 = vmatpush1.msra.mxu0 0.0
    %85 = vmatprep.subr.mxu0 0.0
    %86 = vmatpush1.msra.mxu0 0.0
    %87 = vmatprep.subr.mxu0 0.0
    %88 = vmatpush1.msra.mxu0 0.0
    %89 = vmatprep.subr.mxu0 0.0
    %90 = vmatpush1.msra.mxu0 0.0
    %91 = vmatprep.subr.mxu0 0.0
    %92 = vmatpush1.msra.mxu0 0.0
    %93 = vmatprep.subr.mxu0 0.0
    %94 = vmatpush1.msra.mxu0 0.0
    %95 = vmatprep.subr.mxu0 0.0
    %96 = vmatpush1.msra.mxu0 0.0
    %97 = vmatprep.subr.mxu0 0.0
    %98 = vmatpush1.msra.mxu0 0.0
    %99 = vmatprep.subr.mxu0 0.0
    %100 = vmatpush1.msra.mxu0 0.0
    %101 = vmatprep.subr.mxu0 0.0
    %102 = vmatpush1.msra.mxu0 0.0
    %103 = vmatprep.subr.mxu0 0.0
    %104 = vmatpush1.msra.mxu0 0.0
    %105 = vmatprep.subr.mxu0 0.0
    %106 = vmatpush1.msra.mxu0 0.0
    %107 = vmatprep.subr.mxu0 0.0
    %108 = vmatpush1.msra.mxu0 0.0
    %109 = vmatprep.subr.mxu0 0.0
    %110 = vmatpush1.msra.mxu0 0.0
    %111 = vmatprep.subr.mxu0 0.0
    %112 = vmatpush1.msra.mxu0 0.0
    %113 = vmatprep.subr.mxu0 0.0
    %114 = vmatpush1.msra.mxu0 0.0
    %115 = vmatprep.subr.mxu0 0.0
    %116 = vmatpush1.msra.mxu0 0.0
    %117 = vmatprep.subr.mxu0 0.0
    %118 = vmatpush1.msra.mxu0 0.0
    %119 = vmatprep.subr.mxu0 0.0
    %120 = vmatpush1.msra.mxu0 0.0
    %121 = vmatprep.mubr.f32.mxu0 0.0
    %122 = vmatmul.mubr.f32.gmra.mrb[0].mxu0 %v55
    %v123 = vpop.f32.mrb[0].mxu0
    %v124 = vadd.f32 %v51, %v123
    %v125 = vpop.f32.mrb[0].mxu0
    %126 = vdwg.mxu0
    %127 = vst [vmem:[#allocation7] sm:$0xff] %v124
    // Predicated region
    $region22: #{affine_linear_prepared.1} parent=1 // pred_check
      _
    $region23: #{affine_linear_prepared.1} parent=1 // pred_check_branch
      %129 = sbr.rel (0) target = $region25
    $region24: #{affine_linear_prepared.1} parent=1 // pred_region
      %s131 = ssub.s32 128, 128
      %132 = vsyncadd [#allocation4], %s131
      %s134 = sshll.u32 [#allocation7], 4
      %s135 = int_to_ptr.vmem [resolvable:$true] %s134
      %137 = dma.vmem_to_hbm [thread:$0]  %s135, 128, %s3, [#allocation4]
    $region25: #{affine_linear_prepared.1} parent=1 // pred_fallthru
      _
    // Predicated region
    $region26: #{affine_linear_prepared.1} parent=1 // pred_check
      _
    $region27: #{affine_linear_prepared.1} parent=1 // pred_check_branch
      %139 = sbr.rel (0) target = $region29
    $region28: #{affine_linear_prepared.1} parent=1 // pred_region
      %140 = dma.done [#allocation4], 128
    $region29: #{affine_linear_prepared.1} parent=1 // pred_fallthru
      _
    %141 = vsyncpa [#allocation3], 1
    %142 = vsyncpa [#allocation6], 1
    %143 = vsyncpa [#allocation4], 1

</llo_original>
